<compile_context>
chip_gen: v7x
topology: tpu7x:2x2x1
jax: 0.10.0
libtpu: 0.0.40
codegen_flags: <defaults>
</compile_context>

<pallas_src>
from math import sqrt
import functools

import jax
import jax.numpy as jnp
import numpy as np
from jax.experimental import pallas as pl
from jax.experimental.pallas import tpu as pltpu

_NEG_BIG = -1e30  # finite "-inf": avoids NaN from (-inf) - (-inf) in the online max


def _sdpa_kernel(ft_ref, cnt_ref, q_ref, x_ref, idx_ref, o_ref,
                 m_sc, l_sc, acc_sc, *, tb: int):
    b = pl.program_id(0)
    k = pl.program_id(1)

    @pl.when(k == 0)
    def _init():
        m_sc[...] = jnp.full_like(m_sc, _NEG_BIG)
        l_sc[...] = jnp.zeros_like(l_sc)
        acc_sc[...] = jnp.zeros_like(acc_sc)

    # Skip padded grid steps: this B tile only has cnt_ref[b] useful V tiles.
    @pl.when(k < cnt_ref[b])
    def _compute():
        q = q_ref[...]          # (TB, Dp)  compute dtype, pre-scaled by 1/sqrt(key_dim)
        x = x_ref[...]          # (TV, Dp)  compute dtype
        idx = idx_ref[...]      # (1, TV)   int32 node -> graph index for this V tile

        # scores[b, v] = <Q[b], X[v]>; contraction on the last dim of both operands
        # -- no transposed copy of the streamed X tile is materialized.
        s = jax.lax.dot_general(
            q, x, dimension_numbers=(((1,), (1,)), ((), ())),
            preferred_element_type=jnp.float32)                       # (TB, TV) f32

        # Membership mask rebuilt in-kernel (cheap VPU work hidden under the MXU).
        row_graph = jax.lax.broadcasted_iota(jnp.int32, s.shape, 0) + b * tb
        s = jnp.where(row_graph == idx, s, _NEG_BIG)

        # ---- online softmax with deferred normalization ----
        m_prev = m_sc[...]
        m_new = jnp.maximum(m_prev, jnp.max(s, axis=-1, keepdims=True))
        # Clamp the subtract-off max: rows with no member nodes so far have
        # m_new == _NEG_BIG; subtracting m_safe (>= 0.5*_NEG_BIG) makes their
        # exponent <= -5e29, so exp underflows to 0 -- no mask multiply needed.
        m_safe = jnp.maximum(m_new, 0.5 * _NEG_BIG)
        scale = jnp.exp(m_prev - m_new)                               # rescale old state
        p = jnp.exp(s - m_safe)                                       # (TB, TV) f32

        l_sc[...] = scale * l_sc[...] + jnp.sum(p, axis=-1, keepdims=True)
        acc_sc[...] = scale * acc_sc[...] + jnp.dot(
            p.astype(x.dtype), x, preferred_element_type=jnp.float32)
        m_sc[...] = m_new

    @pl.when(k == pl.num_programs(1) - 1)
    def _finalize():
        denom = jnp.maximum(l_sc[...], 1e-30)      # guard empty / padded graphs -> 0
        o_ref[...] = (acc_sc[...] * pl.reciprocal(denom, approx=True)).astype(o_ref.dtype)


def _round_up(x: int, m: int) -> int:
    return ((x + m - 1) // m) * m


def sdp_attention(Q: jax.Array, X: jax.Array, batch_node_index: jax.Array,
                  num_graphs: int, key_dim: int, *,
                  compute_dtype=jnp.bfloat16, tv: int = 512, tb: int | None = None,
                  block_sparse: bool = True) -> jax.Array:
    """Pallas SDPAttention forward.

    Q: (B, D), X: (V, D), batch_node_index: (V,) int in [0, B). Returns (B, D) float32.
    `compute_dtype` controls MXU operand precision (softmax math is always f32).
    `block_sparse=True` computes per-B-tile V-tile ranges on the host (requires
    concrete batch_node_index, i.e. called outside jit) and skips non-member tiles.
    Empty graphs return an all-zero row (documented API behavior).
    """
    B, D = Q.shape
    V, Dx = X.shape
    assert Dx == D and B == num_graphs

    # --- pad to hardware tiles: D -> lane (128), B -> sublane (8), V -> V-tile ---
    Dp = _round_up(D, 128)
    Bp = _round_up(B, 8)
    if tb is None:
        # With the block-sparse skip, wasted compute per visited tile scales with TB,
        # so keep TB modest; in the dense fallback X is re-streamed nb times, so
        # maximize TB instead (v7x: pass tb explicitly to keep nb >= 2 for megacore).
        tb = 128 if block_sparse else 512
    TB = min(tb, Bp)
    Bp = _round_up(Bp, TB)
    TV = min(tv, _round_up(V, 128))
    Vp = _round_up(V, TV)
    nb, nv = Bp // TB, Vp // TV

    inv_sqrt_key_dim = 1.0 / sqrt(key_dim)

    # Fold the score scale into the (tiny) Q cast instead of a per-tile multiply.
    q_scaled = (Q.astype(jnp.float32) * inv_sqrt_key_dim).astype(compute_dtype)
    if (B, D) == (Bp, Dp):
        q_p = q_scaled
    else:
        q_p = jnp.zeros((Bp, Dp), compute_dtype).at[:B, :D].set(q_scaled)

    # Skip the padded X copy (full HBM rewrite of X) when already aligned.
    if (V, D) == (Vp, Dp) and X.dtype == jnp.dtype(compute_dtype):
        x_p = X
    else:
        x_p = jnp.zeros((Vp, Dp), compute_dtype).at[:V, :D].set(X.astype(compute_dtype))

    bni = batch_node_index.astype(jnp.int32)
    if V == Vp:
        idx_p = bni.reshape(1, Vp)
    else:
        # Padded nodes get index -1 so no graph claims them.
        idx_p = jnp.full((1, Vp), -1, jnp.int32).at[0, :V].set(bni)

    # --- per-B-tile covering V-tile ranges (host-side; correct for any ordering) ---
    if block_sparse:
        idx_np = np.asarray(jax.device_get(bni))
        node_pos = np.arange(V)
        first_tile = np.zeros((nb,), np.int32)
        count = np.ones((nb,), np.int32)
        for b in range(nb):
            members = (idx_np >= b * TB) & (idx_np < (b + 1) * TB)
            if members.any():
                lo = int(node_pos[members].min()) // TV
                hi = int(node_pos[members].max()) // TV
                first_tile[b] = lo
                count[b] = hi - lo + 1
        max_tiles = int(count.max())
    else:
        first_tile = np.zeros((nb,), np.int32)
        count = np.full((nb,), nv, np.int32)
        max_tiles = nv

    ft = jnp.asarray(first_tile)
    cnt = jnp.asarray(count)

    kernel = functools.partial(_sdpa_kernel, tb=TB)

    # Data-dependent index maps: k -> real V-tile index, clamped inside the valid
    # range (padded steps re-visit the last tile; Pallas skips the redundant DMA
    # and pl.when skips the compute).
    def q_map(b, k, ft_ref, cnt_ref):
        return (b, 0)

    def x_map(b, k, ft_ref, cnt_ref):
        return (ft_ref[b] + jnp.minimum(k, cnt_ref[b] - 1), 0)

    def i_map(b, k, ft_ref, cnt_ref):
        return (0, ft_ref[b] + jnp.minimum(k, cnt_ref[b] - 1))

    def o_map(b, k, ft_ref, cnt_ref):
        return (b, 0)

    itemsize = jnp.dtype(compute_dtype).itemsize
    total_tiles = int(count.sum())
    cost = pl.CostEstimate(
        flops=4 * total_tiles * TB * TV * Dp,
        transcendentals=total_tiles * TB * TV,
        bytes_accessed=(Bp * Dp * itemsize               # Q
                        + total_tiles * TV * Dp * itemsize  # X tiles actually visited
                        + total_tiles * TV * 4              # index stream
                        + Bp * Dp * 4))                     # output

    out = pl.pallas_call(
        kernel,
        out_shape=jax.ShapeDtypeStruct((Bp, Dp), jnp.float32),
        grid_spec=pltpu.PrefetchScalarGridSpec(
            num_scalar_prefetch=2,
            grid=(nb, max_tiles),
            in_specs=[
                pl.BlockSpec((TB, Dp), q_map),    # Q tile (resident over k)
                pl.BlockSpec((TV, Dp), x_map),    # X tile (streamed, block-sparse)
                pl.BlockSpec((1, TV), i_map),     # node -> graph ids
            ],
            out_specs=pl.BlockSpec((TB, Dp), o_map),
            scratch_shapes=[
                pltpu.VMEM((TB, 1), jnp.float32),    # running max
                pltpu.VMEM((TB, 1), jnp.float32),    # running sum
                pltpu.VMEM((TB, Dp), jnp.float32),   # unnormalized accumulator
            ]),
        compiler_params=pltpu.CompilerParams(
            dimension_semantics=("parallel", "arbitrary"),
            vmem_limit_bytes=32 * 1024 * 1024),
        cost_estimate=cost,
    )(ft, cnt, q_p, x_p, idx_p)

    return out[:B, :D]


def _reference(Q, X, batch_idx, num_graphs, key_dim):
    scores = jnp.sum(Q[batch_idx] * X, axis=-1) / sqrt(key_dim)             # (V,)
    smax = jax.ops.segment_max(scores, batch_idx, num_segments=num_graphs)  # (B,)
    e = jnp.exp(scores - smax[batch_idx])
    denom = jax.ops.segment_sum(e, batch_idx, num_segments=num_graphs)
    alpha = e / denom[batch_idx]                                            # (V,)
    return jax.ops.segment_sum(alpha[:, None] * X, batch_idx, num_segments=num_graphs)


if __name__ == "__main__":
    key = jax.random.PRNGKey(0)
    kq, kx, kp, kq2, kx2, kp2 = jax.random.split(key, 6)

    # ---- small case (matches the module's typical tiny forward) ----
    B, V, D = 4, 32, 32
    KEY_DIM = D   # DEFAULT_HIDDEN_DIM stand-in
    Q = jax.random.normal(kq, (B, D), dtype=jnp.float32)
    X = jax.random.normal(kx, (V, D), dtype=jnp.float32)
    batch_node_index = jnp.repeat(jnp.arange(B, dtype=jnp.int32), V // B)
    ref = _reference(Q, X, batch_node_index, B, KEY_DIM)

    # f32 MXU path (tight check)
    out_f32 = jax.block_until_ready(
        sdp_attention(Q, X, batch_node_index, B, KEY_DIM, compute_dtype=jnp.float32))
    np.testing.assert_allclose(np.asarray(out_f32), np.asarray(ref), rtol=1e-2, atol=1e-2)

    # bf16 MXU path (default; softmax math still f32)
    out_bf16 = jax.block_until_ready(
        sdp_attention(Q, X, batch_node_index, B, KEY_DIM))
    np.testing.assert_allclose(np.asarray(out_bf16), np.asarray(ref), rtol=5e-2, atol=5e-2)

    # Unsorted membership with block-sparse ranges (still correct, just less tight).
    perm_idx = jax.random.permutation(kp, batch_node_index)
    ref_perm = _reference(Q, X, perm_idx, B, KEY_DIM)
    out_perm = jax.block_until_ready(
        sdp_attention(Q, X, perm_idx, B, KEY_DIM, compute_dtype=jnp.float32))
    np.testing.assert_allclose(np.asarray(out_perm), np.asarray(ref_perm), rtol=1e-2, atol=1e-2)

    # ---- larger case: multiple B tiles and V tiles, exercises the skip path ----
    B2, V2, D2 = 24, 600, 48
    Q2 = jax.random.normal(kq2, (B2, D2), dtype=jnp.float32)
    X2 = jax.random.normal(kx2, (V2, D2), dtype=jnp.float32)
    idx2 = jnp.repeat(jnp.arange(B2, dtype=jnp.int32), V2 // B2)
    ref2 = _reference(Q2, X2, idx2, B2, D2)
    out2 = jax.block_until_ready(
        sdp_attention(Q2, X2, idx2, B2, D2, compute_dtype=jnp.float32, tb=8, tv=512))
    np.testing.assert_allclose(np.asarray(out2), np.asarray(ref2), rtol=1e-2, atol=1e-2)

    # Dense fallback (block_sparse=False) with permuted indices: many (b, k) tiles
    # have rows with no member nodes -> validates the clamp-instead-of-mask path.
    idx2_perm = jax.random.permutation(kp2, idx2)
    ref2p = _reference(Q2, X2, idx2_perm, B2, D2)
    out2p = jax.block_until_ready(
        sdp_attention(Q2, X2, idx2_perm, B2, D2, compute_dtype=jnp.float32,
                      tb=8, tv=512, block_sparse=False))
    np.testing.assert_allclose(np.asarray(out2p), np.asarray(ref2p), rtol=1e-2, atol=1e-2)

    print("KERNEL_OK")
</pallas_src>

<mosaic_0001>
module attributes {stable_mosaic.version = 11 : i64} {
  func.func @_sdpa_kernel(%arg0: i32, %arg1: i32, %arg2: memref<1xi32, #tpu.memory_space<smem>>, %arg3: memref<1xi32, #tpu.memory_space<smem>>, %arg4: memref<8x128xf32, #tpu.memory_space<vmem>>, %arg5: memref<128x128xf32, #tpu.memory_space<vmem>>, %arg6: memref<1x128xi32, #tpu.memory_space<vmem>>, %arg7: memref<8x128xf32, #tpu.memory_space<vmem>>, %arg8: memref<8x1xf32, #tpu.memory_space<vmem>>, %arg9: memref<8x1xf32, #tpu.memory_space<vmem>>, %arg10: memref<8x128xf32, #tpu.memory_space<vmem>>) attributes {dimension_semantics = [#tpu.dimension_semantics<parallel>, #tpu.dimension_semantics<arbitrary>], iteration_bounds = array<i64: 1, 1>, scalar_prefetch = 2 : i64, scratch_operands = 3 : i64, tpu.core_type = #tpu.core_type<tc>, window_params = [{transform_indices = @transform_0, window_bounds = array<i64: 8, 128>}, {transform_indices = @transform_1, window_bounds = array<i64: 128, 128>}, {transform_indices = @transform_2, window_bounds = array<i64: 1, 128>}, {transform_indices = @transform_3, window_bounds = array<i64: 8, 128>}]} {
    %c0_i32 = arith.constant 0 : i32
    %0 = arith.cmpi eq, %arg1, %c0_i32 : i32
    %1 = arith.extui %0 : i1 to i32
    %c0_i32_0 = arith.constant 0 : i32
    %2 = arith.cmpi ne, %1, %c0_i32_0 : i32
    scf.if %2 {
      %cst = arith.constant -1.000000e+30 : f32
      %11 = vector.broadcast %cst : f32 to vector<8x1xf32>
      %c0 = arith.constant 0 : index
      %c0_4 = arith.constant 0 : index
      %12 = vector.load %arg8[%c0, %c0_4] : memref<8x1xf32, #tpu.memory_space<vmem>>, vector<8x1xf32>
      tpu.vector_store %arg8[%c0, %c0_4], %11 {strides = array<i32>} : memref<8x1xf32, #tpu.memory_space<vmem>>, vector<8x1xf32>,
      %cst_5 = arith.constant 0.000000e+00 : f32
      %13 = vector.broadcast %cst_5 : f32 to vector<8x1xf32>
      %c0_6 = arith.constant 0 : index
      %c0_7 = arith.constant 0 : index
      %14 = vector.load %arg9[%c0_6, %c0_7] : memref<8x1xf32, #tpu.memory_space<vmem>>, vector<8x1xf32>
      tpu.vector_store %arg9[%c0_6, %c0_7], %13 {strides = array<i32>} : memref<8x1xf32, #tpu.memory_space<vmem>>, vector<8x1xf32>,
      %cst_8 = arith.constant 0.000000e+00 : f32
      %15 = vector.broadcast %cst_8 : f32 to vector<8x128xf32>
      %c0_9 = arith.constant 0 : index
      %c0_10 = arith.constant 0 : index
      %16 = vector.load %arg10[%c0_9, %c0_10] : memref<8x128xf32, #tpu.memory_space<vmem>>, vector<8x128xf32>
      tpu.vector_store %arg10[%c0_9, %c0_10], %15 {strides = array<i32>} : memref<8x128xf32, #tpu.memory_space<vmem>>, vector<8x128xf32>,
    } else {
    }
    %3 = arith.index_cast %arg0 : i32 to index
    %4 = memref.load %arg3[%3] : memref<1xi32, #tpu.memory_space<smem>>
    %5 = arith.cmpi slt, %arg1, %4 : i32
    %6 = arith.extui %5 : i1 to i32
    %c0_i32_1 = arith.constant 0 : i32
    %7 = arith.cmpi ne, %6, %c0_i32_1 : i32
    scf.if %7 {
      %c0 = arith.constant 0 : index
      %c0_4 = arith.constant 0 : index
      %11 = vector.load %arg4[%c0, %c0_4] : memref<8x128xf32, #tpu.memory_space<vmem>>, vector<8x128xf32>
      %c0_5 = arith.constant 0 : index
      %c0_6 = arith.constant 0 : index
      %12 = vector.load %arg5[%c0_5, %c0_6] : memref<128x128xf32, #tpu.memory_space<vmem>>, vector<128x128xf32>
      %c0_7 = arith.constant 0 : index
      %c0_8 = arith.constant 0 : index
      %13 = vector.load %arg6[%c0_7, %c0_8] : memref<1x128xi32, #tpu.memory_space<vmem>>, vector<1x128xi32>
      %cst = arith.constant dense<0.000000e+00> : vector<8x128xf32>
      %14 = tpu.matmul %11, %12, %cst {dimension_numbers = #tpu.dot_dimension_numbers<[1], [1], [0], [0], [0, 0, 1, 0], [], []>} : vector<8x128xf32>, vector<128x128xf32>, vector<8x128xf32> -> vector<8x128xf32>
      %15 = tpu.iota {dimensions = array<i32: 0>} : vector<8x128xi32>
      %c8_i32 = arith.constant 8 : i32
      %16 = arith.muli %arg0, %c8_i32 : i32
      %17 = vector.broadcast %16 : i32 to vector<8x128xi32>
      %18 = arith.addi %15, %17 : vector<8x128xi32>
      %19 = vector.broadcast %13 : vector<1x128xi32> to vector<8x128xi32>
      %20 = arith.cmpi eq, %18, %19 : vector<8x128xi32>
      %cst_9 = arith.constant -1.000000e+30 : f32
      %21 = vector.broadcast %cst_9 : f32 to vector<8x128xf32>
      %22 = arith.select %20, %14, %21 : vector<8x128xi1>, vector<8x128xf32>
      %c0_10 = arith.constant 0 : index
      %c0_11 = arith.constant 0 : index
      %23 = vector.load %arg8[%c0_10, %c0_11] : memref<8x1xf32, #tpu.memory_space<vmem>>, vector<8x1xf32>
      %cst_12 = arith.constant dense<0xFF800000> : vector<8xf32>
      %24 = vector.multi_reduction <maximumf>, %22, %cst_12 [1] : vector<8x128xf32> to vector<8xf32>
      %25 = vector.shape_cast %24 : vector<8xf32> to vector<8x1xf32>
      %26 = arith.maximumf %23, %25 : vector<8x1xf32>
      %cst_13 = arith.constant -5.000000e+29 : f32
      %27 = vector.broadcast %cst_13 : f32 to vector<8x1xf32>
      %28 = arith.maximumf %26, %27 : vector<8x1xf32>
      %29 = arith.subf %23, %26 : vector<8x1xf32>
      %30 = math.exp %29 : vector<8x1xf32>
      %31 = vector.broadcast %28 : vector<8x1xf32> to vector<8x128xf32>
      %32 = arith.subf %22, %31 : vector<8x128xf32>
      %33 = math.exp %32 : vector<8x128xf32>
      %c0_14 = arith.constant 0 : index
      %c0_15 = arith.constant 0 : index
      %34 = vector.load %arg9[%c0_14, %c0_15] : memref<8x1xf32, #tpu.memory_space<vmem>>, vector<8x1xf32>
      %35 = arith.mulf %30, %34 : vector<8x1xf32>
      %cst_16 = arith.constant dense<0.000000e+00> : vector<8xf32>
      %36 = vector.multi_reduction <add>, %33, %cst_16 [1] : vector<8x128xf32> to vector<8xf32>
      %37 = vector.shape_cast %36 : vector<8xf32> to vector<8x1xf32>
      %38 = arith.addf %35, %37 : vector<8x1xf32>
      %c0_17 = arith.constant 0 : index
      %c0_18 = arith.constant 0 : index
      %39 = vector.load %arg9[%c0_17, %c0_18] : memref<8x1xf32, #tpu.memory_space<vmem>>, vector<8x1xf32>
      tpu.vector_store %arg9[%c0_17, %c0_18], %38 {strides = array<i32>} : memref<8x1xf32, #tpu.memory_space<vmem>>, vector<8x1xf32>,
      %c0_19 = arith.constant 0 : index
      %c0_20 = arith.constant 0 : index
      %40 = vector.load %arg10[%c0_19, %c0_20] : memref<8x128xf32, #tpu.memory_space<vmem>>, vector<8x128xf32>
      %41 = vector.broadcast %30 : vector<8x1xf32> to vector<8x128xf32>
      %42 = arith.mulf %41, %40 : vector<8x128xf32>
      %cst_21 = arith.constant dense<0.000000e+00> : vector<8x128xf32>
      %43 = tpu.matmul %33, %12, %cst_21 {dimension_numbers = #tpu.dot_dimension_numbers<[1], [0], [0], [1], [0, 0, 1, 1], [], []>} : vector<8x128xf32>, vector<128x128xf32>, vector<8x128xf32> -> vector<8x128xf32>
      %44 = arith.addf %42, %43 : vector<8x128xf32>
      %c0_22 = arith.constant 0 : index
      %c0_23 = arith.constant 0 : index
      %45 = vector.load %arg10[%c0_22, %c0_23] : memref<8x128xf32, #tpu.memory_space<vmem>>, vector<8x128xf32>
      tpu.vector_store %arg10[%c0_22, %c0_23], %44 {strides = array<i32>} : memref<8x128xf32, #tpu.memory_space<vmem>>, vector<8x128xf32>,
      %c0_24 = arith.constant 0 : index
      %c0_25 = arith.constant 0 : index
      %46 = vector.load %arg8[%c0_24, %c0_25] : memref<8x1xf32, #tpu.memory_space<vmem>>, vector<8x1xf32>
      tpu.vector_store %arg8[%c0_24, %c0_25], %26 {strides = array<i32>} : memref<8x1xf32, #tpu.memory_space<vmem>>, vector<8x1xf32>,
    } else {
    }
    %c0_i32_2 = arith.constant 0 : i32
    %8 = arith.cmpi eq, %arg1, %c0_i32_2 : i32
    %9 = arith.extui %8 : i1 to i32
    %c0_i32_3 = arith.constant 0 : i32
    %10 = arith.cmpi ne, %9, %c0_i32_3 : i32
    scf.if %10 {
      %c0 = arith.constant 0 : index
      %c0_4 = arith.constant 0 : index
      %11 = vector.load %arg9[%c0, %c0_4] : memref<8x1xf32, #tpu.memory_space<vmem>>, vector<8x1xf32>
      %cst = arith.constant 1.000000e-30 : f32
      %12 = vector.broadcast %cst : f32 to vector<8x1xf32>
      %13 = arith.maximumf %11, %12 : vector<8x1xf32>
      %c0_5 = arith.constant 0 : index
      %c0_6 = arith.constant 0 : index
      %14 = vector.load %arg10[%c0_5, %c0_6] : memref<8x128xf32, #tpu.memory_space<vmem>>, vector<8x128xf32>
      %15 = tpu.reciprocal %13 {approx = true} : vector<8x1xf32> -> vector<8x1xf32>
      %16 = vector.broadcast %15 : vector<8x1xf32> to vector<8x128xf32>
      %17 = arith.mulf %14, %16 : vector<8x128xf32>
      %c0_7 = arith.constant 0 : index
      %c0_8 = arith.constant 0 : index
      %18 = vector.load %arg7[%c0_7, %c0_8] : memref<8x128xf32, #tpu.memory_space<vmem>>, vector<8x128xf32>
      tpu.vector_store %arg7[%c0_7, %c0_8], %17 {strides = array<i32>} : memref<8x128xf32, #tpu.memory_space<vmem>>, vector<8x128xf32>,
    } else {
    }
    return
  }
  func.func @transform_0(%arg0: i32, %arg1: i32, %arg2: memref<1xi32, #tpu.memory_space<smem>>, %arg3: memref<1xi32, #tpu.memory_space<smem>>) -> (i32, i32) {
    %c0_i32 = arith.constant 0 : i32
    %c0_i32_0 = arith.constant 0 : i32
    return %arg0, %c0_i32 : i32, i32
  }
  func.func @transform_1(%arg0: i32, %arg1: i32, %arg2: memref<1xi32, #tpu.memory_space<smem>>, %arg3: memref<1xi32, #tpu.memory_space<smem>>) -> (i32, i32) {
    %0 = arith.index_cast %arg0 : i32 to index
    %1 = memref.load %arg2[%0] : memref<1xi32, #tpu.memory_space<smem>>
    %2 = arith.index_cast %arg0 : i32 to index
    %3 = memref.load %arg3[%2] : memref<1xi32, #tpu.memory_space<smem>>
    %c1_i32 = arith.constant 1 : i32
    %4 = arith.subi %3, %c1_i32 : i32
    %5 = arith.minsi %arg1, %4 : i32
    %6 = arith.addi %1, %5 : i32
    %c0_i32 = arith.constant 0 : i32
    %c0_i32_0 = arith.constant 0 : i32
    return %6, %c0_i32 : i32, i32
  }
  func.func @transform_2(%arg0: i32, %arg1: i32, %arg2: memref<1xi32, #tpu.memory_space<smem>>, %arg3: memref<1xi32, #tpu.memory_space<smem>>) -> (i32, i32) {
    %0 = arith.index_cast %arg0 : i32 to index
    %1 = memref.load %arg2[%0] : memref<1xi32, #tpu.memory_space<smem>>
    %2 = arith.index_cast %arg0 : i32 to index
    %3 = memref.load %arg3[%2] : memref<1xi32, #tpu.memory_space<smem>>
    %c1_i32 = arith.constant 1 : i32
    %4 = arith.subi %3, %c1_i32 : i32
    %5 = arith.minsi %arg1, %4 : i32
    %6 = arith.addi %1, %5 : i32
    %c0_i32 = arith.constant 0 : i32
    %c0_i32_0 = arith.constant 0 : i32
    return %c0_i32, %6 : i32, i32
  }
  func.func @transform_3(%arg0: i32, %arg1: i32, %arg2: memref<1xi32, #tpu.memory_space<smem>>, %arg3: memref<1xi32, #tpu.memory_space<smem>>) -> (i32, i32) {
    %c0_i32 = arith.constant 0 : i32
    %c0_i32_0 = arith.constant 0 : i32
    return %arg0, %c0_i32 : i32, i32
  }
}

</mosaic_0001>

<llo_original>
// kernel: tpu_custom_call.1
$region0: #{tpu_custom_call.1}
  #allocation0 [shape = 'u32[]', space=smem, size = 0x4, offset = 0x4, fixed_abs, tag = 'smem constant byte address 0x4 - core index']
  #allocation1 [shape = 'u32[144,128]{1,0:T(1,128)}', space=vmem, size = 0x12000, scoped, tag = 'internal scratch']
  #allocation2 [shape = 'f32[8,1]{1,0:T(8,128)}', space=vmem, size = 0x1000, scoped, tag = 'scratch operand']
  #allocation3 [shape = 'f32[8,1]{1,0:T(8,128)}', space=vmem, size = 0x1000, scoped, tag = 'scratch operand']
  #allocation4 [shape = 'f32[8,128]{1,0:T(8,128)}', space=vmem, size = 0x1000, scoped, tag = 'scratch operand']
  #allocation5 [shape = 's32[1]{0}', space=sflag, size = 0x4, scoped, tag = 'scoped memory for tpu_custom_call.1']
  #allocation6 [shape = 's32[1]{0:T(128)S(6)}', space=smem, size = 0x200, scoped, tag = 'prefetched SMEM operand 0']
  #allocation7 [shape = 's32[1]{0:T(128)S(6)}', space=smem, size = 0x200, scoped, tag = 'prefetched SMEM operand 1']
  %s0 = inlined_call_operand.<no memory space> [shape: s32[1], index: 0, kind: input, shape index: {}]
  %s1 = inlined_call_operand.<no memory space> [shape: s32[1], index: 1, kind: input, shape index: {}]
  %s2 = inlined_call_operand.hbm [shape: f32[8,128], index: 2, kind: input, shape index: {}]
  %s3 = inlined_call_operand.hbm [shape: f32[128,128], index: 3, kind: input, shape index: {}]
  %s4 = inlined_call_operand.vmem [shape: s32[1,128], index: 4, kind: input, shape index: {}]
  %s5 = inlined_call_operand.hbm [shape: f32[8,128], index: 5, kind: output, shape index: {}]
  %s6 = sld [smem:[#allocation0]]
  $region42: #{tpu_custom_call.1} parent=0
    _
  %s8 = ssub.s32 1, %s6
  %s9 = scalar_select 0, %s8, %s6
  %10 = sst [smem:[#allocation6]] %s0
  %11 = sst [smem:[#allocation7]] %s1
  $region1: #{tpu_custom_call.1} parent=0
    #allocation8 [shape = 'u8[4096]{0}', space=vmem, size = 0x1000, scoped, tag = 'input window, operand 2, single buffered']
    #allocation9 [shape = 's32[1]{0}', space=sflag, size = 0x4, scoped, tag = 'scoped memory for tpu_custom_call.1']
    #allocation10 [shape = 's32[1]{0}', space=sflag, size = 0x4, scoped, tag = 'scoped memory for tpu_custom_call.1']
    #allocation11 [shape = 'u8[65536]{0}', space=vmem, size = 0x10000, scoped, tag = 'input window, operand 3, single buffered']
    #allocation12 [shape = 's32[1]{0}', space=sflag, size = 0x4, scoped, tag = 'scoped memory for tpu_custom_call.1']
    #allocation13 [shape = 'u8[4096]{0}', space=vmem, size = 0x1000, scoped, tag = 'output window, operand 0, single buffered']
    %12 = vsyncpa [#allocation9], 0
    %13 = vsyncpa [#allocation12], 0
    %14 = vsyncpa [#allocation10], 0
    // Predicated region
    $region2: #{tpu_custom_call.1} parent=1 // pred_check
      _
    $region3: #{tpu_custom_call.1} parent=1 // pred_check_branch
      %16 = sbr.rel (0) target = $region5
    $region4: #{tpu_custom_call.1} parent=1 // pred_region
      %s18 = ssub.s32 128, 128
      %19 = vsyncadd [#allocation9], %s18
      %s21 = sshll.u32 [#allocation8], 4
      %s22 = int_to_ptr.vmem [resolvable:$true] %s21
      %24 = dma.hbm_to_vmem [thread:$0]  %s2, 128, %s22, [#allocation9]
    $region5: #{tpu_custom_call.1} parent=1 // pred_fallthru
      _
    // Predicated region
    $region6: #{tpu_custom_call.1} parent=1 // pred_check
      _
    $region7: #{tpu_custom_call.1} parent=1 // pred_check_branch
      %26 = sbr.rel (0) target = $region9
    $region8: #{tpu_custom_call.1} parent=1 // pred_region
      %s27 = sld [smem:[#allocation6]]
      %s28 = sld [smem:[#allocation7]]
      %s29 = ssub.s32 %s28, 1
      %p30 = scmp.lt.s32.totalorder 0, %s29
      %s31 = scalar_select %p30, 0, %s29
      %s32 = sadd.s32 %s27, %s31
      %s33 = smul.u32 16, %s32
      %s35 = ssub.s32 2048, 2048
      %36 = vsyncadd [#allocation12], %s35
      %s37 = smul.addr %s33, 128
      %s38 = scalar_lea.hbm %s3, %s37
      %s39 = sshll.u32 [#allocation11], 4
      %s40 = int_to_ptr.vmem [resolvable:$true] %s39
      %45 = dma.hbm_to_vmem [thread:$0]  %s38, 2048, %s40, [#allocation12], 128, 128, 8
    $region9: #{tpu_custom_call.1} parent=1 // pred_fallthru
      _
    // Predicated region
    $region10: #{tpu_custom_call.1} parent=1 // pred_check
      _
    $region11: #{tpu_custom_call.1} parent=1 // pred_check_branch
      %47 = sbr.rel (0) target = $region13
    $region12: #{tpu_custom_call.1} parent=1 // pred_region
      %s48 = sld [smem:[#allocation6]]
      %s49 = sld [smem:[#allocation7]]
      %s50 = ssub.s32 %s49, 1
      %p51 = scmp.lt.s32.totalorder 0, %s50
      %s52 = scalar_select %p51, 0, %s50
      %s53 = sadd.s32 %s48, %s52
      %p54 = scmp.lt.s32.totalorder %s53, 0
      %s55 = scalar_select %p54, %s53, 0
      %s56 = scalar_lea.vmem %s4, %s55
      %s57 = sld [smem:[#allocation6]]
      %s58 = sld [smem:[#allocation7]]
      %s59 = ssub.s32 %s58, 1
      %p60 = scmp.lt.s32.totalorder 0, %s59
      %s61 = scalar_select %p60, 0, %s59
      %s62 = sadd.s32 %s57, %s61
    $region13: #{tpu_custom_call.1} parent=1 // pred_fallthru
      _
    // Predicated region
    $region14: #{tpu_custom_call.1} parent=1 // pred_check
      _
    $region15: #{tpu_custom_call.1} parent=1 // pred_check_branch
      %64 = sbr.rel (0) target = $region17
    $region16: #{tpu_custom_call.1} parent=1 // pred_region
      %65 = dma.done [#allocation9], 128
    $region17: #{tpu_custom_call.1} parent=1 // pred_fallthru
      _
    // Predicated region
    $region18: #{tpu_custom_call.1} parent=1 // pred_check
      _
    $region19: #{tpu_custom_call.1} parent=1 // pred_check_branch
      %67 = sbr.rel (0) target = $region21
    $region20: #{tpu_custom_call.1} parent=1 // pred_region
      %68 = dma.done [#allocation12], 2048
    $region21: #{tpu_custom_call.1} parent=1 // pred_fallthru
      _
    %s69 = sld [smem:[#allocation6]]
    %s70 = sld [smem:[#allocation7]]
    %s71 = ssub.s32 %s70, 1
    %p72 = scmp.lt.s32.totalorder 0, %s71
    %s73 = scalar_select %p72, 0, %s71
    %s74 = sadd.s32 %s69, %s73
    %p75 = scmp.lt.s32.totalorder %s74, 0
    %s76 = scalar_select %p75, %s74, 0
    %s77 = scalar_lea.vmem %s4, %s76
    %s78 = sld [smem:[#allocation6]]
    %s79 = sld [smem:[#allocation7]]
    %s80 = ssub.s32 %s79, 1
    %p81 = scmp.lt.s32.totalorder 0, %s80
    %s82 = scalar_select %p81, 0, %s80
    %s83 = sadd.s32 %s78, %s82
    %s84 = smul.u32 16, %s83
    %s85 = sld [smem:[#allocation6]]
    %s86 = sld [smem:[#allocation7]]
    %s87 = ssub.s32 %s86, 1
    %p88 = scmp.lt.s32.totalorder 0, %s87
    %s89 = scalar_select %p88, 0, %s87
    %s90 = sadd.s32 %s85, %s89
    %p91 = scmp.lt.s32.totalorder %s90, 0
    %s92 = scalar_select %p91, %s90, 0
    %s93 = scalar_lea.vmem %s4, %s92
    %s94 = sld [smem:[#allocation6]]
    %s95 = sld [smem:[#allocation7]]
    %s96 = ssub.s32 %s95, 1
    %p97 = scmp.lt.s32.totalorder 0, %s96
    %s98 = scalar_select %p97, 0, %s96
    %s99 = sadd.s32 %s94, %s98
    %p100 = scmp.eq.s32.totalorder 0, 0
    // Predicated region
    $region22: #{tpu_custom_call.1} parent=1 // pred_check
      %p101 = pneg %p100
    $region23: #{tpu_custom_call.1} parent=1 // pred_check_branch
      %103 = sbr.rel (%p101) target = $region25
    $region24: #{tpu_custom_call.1} parent=1 // pred_region
      %vm104 = vcmask 7168
      %105 = vst.msk [vmem:[#allocation2] sm:$0xff] %vm104, -1e+30
      %106 = vst.msk [vmem:[#allocation3] sm:$0xff] %vm104, 0.0
      %107 = vst [vmem:[#allocation4] sm:$0xff] 0.0
    $region25: #{tpu_custom_call.1} parent=1 // pred_fallthru
      _
    %s108 = sld [smem:[#allocation7]]
    %p109 = scmp.lt.s32.totalorder 0, %s108
    // Predicated region
    $region26: #{tpu_custom_call.1} parent=1 // pred_check
      %p110 = pneg %p109
    $region27: #{tpu_custom_call.1} parent=1 // pred_check_branch
      %112 = sbr.rel (%p110) target = $region29
    $region28: #{tpu_custom_call.1} parent=1 // pred_region
      %v113 = vld [vmem:[#allocation8] sm:$0xff]
      %v114 = vld [vmem:[#allocation11] sm:$0xff]
      %v115 = vld [vmem:[#allocation11 + $0x8] sm:$0xff]
      %v116 = vld [vmem:[#allocation11 + $0x10] sm:$0xff]
      %v117 = vld [vmem:[#allocation11 + $0x18] sm:$0xff]
      %v118 = vld [vmem:[#allocation11 + $0x20] sm:$0xff]
      %v119 = vld [vmem:[#allocation11 + $0x28] sm:$0xff]
      %v120 = vld [vmem:[#allocation11 + $0x30] sm:$0xff]
      %v121 = vld [vmem:[#allocation11 + $0x38] sm:$0xff]
      %v122 = vld [vmem:[#allocation11 + $0x40] sm:$0xff]
      %v123 = vld [vmem:[#allocation11 + $0x48] sm:$0xff]
      %v124 = vld [vmem:[#allocation11 + $0x50] sm:$0xff]
      %v125 = vld [vmem:[#allocation11 + $0x58] sm:$0xff]
      %v126 = vld [vmem:[#allocation11 + $0x60] sm:$0xff]
      %v127 = vld [vmem:[#allocation11 + $0x68] sm:$0xff]
      %v128 = vld [vmem:[#allocation11 + $0x70] sm:$0xff]
      %v129 = vld [vmem:[#allocation11 + $0x78] sm:$0xff]
      %v130 = vld [vmem:[%s93] sm:$0x1]
      %131 = vmatprep.subr.mxu0 0.0
      %132 = vmatpush1.xpose.msra.mxu0 %v114
      %133 = vmatprep.subr.mxu0 0.0
      %134 = vmatpush1.xpose.msra.mxu0 %v115
      %135 = vmatprep.subr.mxu0 0.0
      %136 = vmatpush1.xpose.msra.mxu0 %v116
      %137 = vmatprep.subr.mxu0 0.0
      %138 = vmatpush1.xpose.msra.mxu0 %v117
      %139 = vmatprep.subr.mxu0 0.0
      %140 = vmatpush1.xpose.msra.mxu0 %v118
      %141 = vmatprep.subr.mxu0 0.0
      %142 = vmatpush1.xpose.msra.mxu0 %v119
      %143 = vmatprep.subr.mxu0 0.0
      %144 = vmatpush1.xpose.msra.mxu0 %v120
      %145 = vmatprep.subr.mxu0 0.0
      %146 = vmatpush1.xpose.msra.mxu0 %v121
      %147 = vmatprep.subr.mxu0 0.0
      %148 = vmatpush1.xpose.msra.mxu0 %v122
      %149 = vmatprep.subr.mxu0 0.0
      %150 = vmatpush1.xpose.msra.mxu0 %v123
      %151 = vmatprep.subr.mxu0 0.0
      %152 = vmatpush1.xpose.msra.mxu0 %v124
      %153 = vmatprep.subr.mxu0 0.0
      %154 = vmatpush1.xpose.msra.mxu0 %v125
      %155 = vmatprep.subr.mxu0 0.0
      %156 = vmatpush1.xpose.msra.mxu0 %v126
      %157 = vmatprep.subr.mxu0 0.0
      %158 = vmatpush1.xpose.msra.mxu0 %v127
      %159 = vmatprep.subr.mxu0 0.0
      %160 = vmatpush1.xpose.msra.mxu0 %v128
      %161 = vmatprep.subr.mxu0 0.0
      %162 = vmatpush1.xpose.msra.mxu0 %v129
      %163 = vmatprep.subr.mxu0 0.0
      %164 = vmatpush1.xpose.msra.mxu0 0.0
      %165 = vmatprep.subr.mxu0 0.0
      %166 = vmatpush1.xpose.msra.mxu0 0.0
      %167 = vmatprep.subr.mxu0 0.0
      %168 = vmatpush1.xpose.msra.mxu0 0.0
      %169 = vmatprep.subr.mxu0 0.0
      %170 = vmatpush1.xpose.msra.mxu0 0.0
      %171 = vmatprep.subr.mxu0 0.0
      %172 = vmatpush1.xpose.msra.mxu0 0.0
      %173 = vmatprep.subr.mxu0 0.0
      %174 = vmatpush1.xpose.msra.mxu0 0.0
      %175 = vmatprep.subr.mxu0 0.0
      %176 = vmatpush1.xpose.msra.mxu0 0.0
      %177 = vmatprep.subr.mxu0 0.0
      %178 = vmatpush1.xpose.msra.mxu0 0.0
      %179 = vmatprep.subr.mxu0 0.0
      %180 = vmatpush1.xpose.msra.mxu0 0.0
      %181 = vmatprep.subr.mxu0 0.0
      %182 = vmatpush1.xpose.msra.mxu0 0.0
      %183 = vmatprep.subr.mxu0 0.0
      %184 = vmatpush1.xpose.msra.mxu0 0.0
      %185 = vmatprep.subr.mxu0 0.0
      %186 = vmatpush1.xpose.msra.mxu0 0.0
      %187 = vmatprep.subr.mxu0 0.0
      %188 = vmatpush1.xpose.msra.mxu0 0.0
      %189 = vmatprep.subr.mxu0 0.0
      %190 = vmatpush1.xpose.msra.mxu0 0.0
      %191 = vmatprep.subr.mxu0 0.0
      %192 = vmatpush1.xpose.msra.mxu0 0.0
      %193 = vmatprep.subr.mxu0 0.0
      %194 = vmatpush1.xpose.msra.mxu0 0.0
      %195 = vmatprep.mubr.f32.mxu0 0.0
      %196 = vmatmul.mubr.f32.gmra.mrb[0].mxu0 %v113
      %v197 = vpop.f32.mrb[0].mxu0
      %v198 = vadd.f32 0.0, %v197
      %v199 = vpop.f32.mrb[0].mxu0
      %200 = vdwg.mxu0
      %v201 = vlaneseq
      %v202 = vshrl.u32 %v201, 7
      %s203 = smul.u32 0, 8
      %v204 = vstv %s203
      %v205 = vadd.s32 %v202, %v204
      %v206 = vlaneseq
      %v207 = vshrl.u32 %v206, 7
      %v208 = vsub.s32 0, %v207
      %v209 = vrot.slane %v130, %v208
      %vm210 = vcmp.eq.s32.totalorder %v205, %v209
      %v211 = vsel %vm210, %v198, -1e+30
      %v212 = vld [vmem:[#allocation2] sm:$0xff]
      %213 = vmax.xlane.f32.xlu0 %v211
      %v214 = vpop.xlane.xlu0 %213
      %v215 = vmax.f32 %v212, %v214
      %v216 = vmax.f32 %v215, -5e+29
      %v217 = vsub.f32 %v212, %v215
      %v218 = vmul.f32 %v217, 1.442695
      %v219 = vpow.pop %v218
      %221 = vset.pattern.permute.xlu0 0
      %222 = vperm.xlu0 %221, %v216
      %v223 = vpop.permute.xlu0 %222
      %v225 = vsub.f32 %v211, %v223
      %v226 = vmul.f32 %v225, 1.442695
      %v227 = vpow.pop %v226
      %v228 = vld [vmem:[#allocation3] sm:$0xff]
      %v229 = vmul.f32 %v219, %v228
      %230 = vadd.xlane.f32.xlu0 %v227
      %v231 = vpop.xlane.xlu0 %230
      %v232 = vadd.f32 %v229, %v231
      %vm233 = vcmask 7168
      %234 = vst.msk [vmem:[#allocation3] sm:$0xff] %vm233, %v232
      %v235 = vld [vmem:[#allocation4] sm:$0xff]
      %237 = vset.pattern.permute.xlu0 0
      %238 = vperm.xlu0 %237, %v219
      %v239 = vpop.permute.xlu0 %238
      %v241 = vmul.f32 %v239, %v235
      %242 = vmatprep.subr.mxu0 0.0
      %243 = vmatpush1.msra.mxu0 %v114
      %244 = vmatprep.subr.mxu0 0.0
      %245 = vmatpush1.msra.mxu0 %v115
      %246 = vmatprep.subr.mxu0 0.0
      %247 = vmatpush1.msra.mxu0 %v116
      %248 = vmatprep.subr.mxu0 0.0
      %249 = vmatpush1.msra.mxu0 %v117
      %250 = vmatprep.subr.mxu0 0.0
      %251 = vmatpush1.msra.mxu0 %v118
      %252 = vmatprep.subr.mxu0 0.0
      %253 = vmatpush1.msra.mxu0 %v119
      %254 = vmatprep.subr.mxu0 0.0
      %255 = vmatpush1.msra.mxu0 %v120
      %256 = vmatprep.subr.mxu0 0.0
      %257 = vmatpush1.msra.mxu0 %v121
      %258 = vmatprep.subr.mxu0 0.0
      %259 = vmatpush1.msra.mxu0 %v122
      %260 = vmatprep.subr.mxu0 0.0
      %261 = vmatpush1.msra.mxu0 %v123
      %262 = vmatprep.subr.mxu0 0.0
      %263 = vmatpush1.msra.mxu0 %v124
      %264 = vmatprep.subr.mxu0 0.0
      %265 = vmatpush1.msra.mxu0 %v125
      %266 = vmatprep.subr.mxu0 0.0
      %267 = vmatpush1.msra.mxu0 %v126
      %268 = vmatprep.subr.mxu0 0.0
      %269 = vmatpush1.msra.mxu0 %v127
      %270 = vmatprep.subr.mxu0 0.0
      %271 = vmatpush1.msra.mxu0 %v128
      %272 = vmatprep.subr.mxu0 0.0
      %273 = vmatpush1.msra.mxu0 %v129
      %274 = vmatprep.subr.mxu0 0.0
      %275 = vmatpush1.msra.mxu0 0.0
      %276 = vmatprep.subr.mxu0 0.0
      %277 = vmatpush1.msra.mxu0 0.0
      %278 = vmatprep.subr.mxu0 0.0
      %279 = vmatpush1.msra.mxu0 0.0
      %280 = vmatprep.subr.mxu0 0.0
      %281 = vmatpush1.msra.mxu0 0.0
      %282 = vmatprep.subr.mxu0 0.0
      %283 = vmatpush1.msra.mxu0 0.0
      %284 = vmatprep.subr.mxu0 0.0
      %285 = vmatpush1.msra.mxu0 0.0
      %286 = vmatprep.subr.mxu0 0.0
      %287 = vmatpush1.msra.mxu0 0.0
      %288 = vmatprep.subr.mxu0 0.0
      %289 = vmatpush1.msra.mxu0 0.0
      %290 = vmatprep.subr.mxu0 0.0
      %291 = vmatpush1.msra.mxu0 0.0
      %292 = vmatprep.subr.mxu0 0.0
      %293 = vmatpush1.msra.mxu0 0.0
      %294 = vmatprep.subr.mxu0 0.0
      %295 = vmatpush1.msra.mxu0 0.0
      %296 = vmatprep.subr.mxu0 0.0
      %297 = vmatpush1.msra.mxu0 0.0
      %298 = vmatprep.subr.mxu0 0.0
      %299 = vmatpush1.msra.mxu0 0.0
      %300 = vmatprep.subr.mxu0 0.0
      %301 = vmatpush1.msra.mxu0 0.0
      %302 = vmatprep.subr.mxu0 0.0
      %303 = vmatpush1.msra.mxu0 0.0
      %304 = vmatprep.subr.mxu0 0.0
      %305 = vmatpush1.msra.mxu0 0.0
      %306 = vmatprep.mubr.f32.mxu0 0.0
      %307 = vmatmul.mubr.f32.gmra.mrb[0].mxu0 %v227
      %v308 = vpop.f32.mrb[0].mxu0
      %v309 = vadd.f32 0.0, %v308
      %v310 = vpop.f32.mrb[0].mxu0
      %311 = vdwg.mxu0
      %v312 = vadd.f32 %v241, %v309
      %313 = vst [vmem:[#allocation4] sm:$0xff] %v312
      %314 = vst.msk [vmem:[#allocation2] sm:$0xff] %vm233, %v215
    $region29: #{tpu_custom_call.1} parent=1 // pred_fallthru
      _
    // Predicated region
    $region30: #{tpu_custom_call.1} parent=1 // pred_check
      %p315 = pneg %p100
    $region31: #{tpu_custom_call.1} parent=1 // pred_check_branch
      %317 = sbr.rel (%p315) target = $region33
    $region32: #{tpu_custom_call.1} parent=1 // pred_region
      %v318 = vld [vmem:[#allocation3] sm:$0xff]
      %v319 = vmax.f32 %v318, 1e-30
      %v320 = vld [vmem:[#allocation4] sm:$0xff]
      %v321 = vrcp.pop %v319
      %323 = vset.pattern.permute.xlu0 0
      %324 = vperm.xlu0 %323, %v321
      %v325 = vpop.permute.xlu0 %324
      %v327 = vmul.f32 %v320, %v325
      %328 = vst [vmem:[#allocation13] sm:$0xff] %v327
    $region33: #{tpu_custom_call.1} parent=1 // pred_fallthru
      _
    // Predicated region
    $region34: #{tpu_custom_call.1} parent=1 // pred_check
      _
    $region35: #{tpu_custom_call.1} parent=1 // pred_check_branch
      %330 = sbr.rel (0) target = $region37
    $region36: #{tpu_custom_call.1} parent=1 // pred_region
      %s332 = ssub.s32 128, 128
      %333 = vsyncadd [#allocation10], %s332
      %s335 = sshll.u32 [#allocation13], 4
      %s336 = int_to_ptr.vmem [resolvable:$true] %s335
      %338 = dma.vmem_to_hbm [thread:$0]  %s336, 128, %s5, [#allocation10]
    $region37: #{tpu_custom_call.1} parent=1 // pred_fallthru
      _
    // Predicated region
    $region38: #{tpu_custom_call.1} parent=1 // pred_check
      _
    $region39: #{tpu_custom_call.1} parent=1 // pred_check_branch
      %340 = sbr.rel (0) target = $region41
    $region40: #{tpu_custom_call.1} parent=1 // pred_region
      %341 = dma.done [#allocation10], 128
    $region41: #{tpu_custom_call.1} parent=1 // pred_fallthru
      _
    %342 = vsyncpa [#allocation9], 1
    %343 = vsyncpa [#allocation12], 1
    %344 = vsyncpa [#allocation10], 1

</llo_original>
